<compile_context>
chip_gen: v7x
topology: tpu7x:2x2x1
jax: 0.10.0
libtpu: 0.0.40
codegen_flags: <defaults>
</compile_context>

<pallas_src>
import functools
import math

import jax
import jax.numpy as jnp
from jax.experimental import pallas as pl
from jax.experimental.pallas import tpu as pltpu

LANES = 128
SUBLANES = 8


def _wmse_kernel(*refs, rows_total, has_weight):
    """Accumulate sum(w * (o - t)^2) over one (tr, 128) tile.

    When `has_weight`, the first ref is either (tr, 1) (per-row weight,
    fast path) or (tr, 128) (element-wise weight, generic fallback); it
    broadcasts against the data.  When not, only (o, t) data refs arrive
    and the scalar weight is applied outside the kernel.
    """
    if has_weight:
        w_ref, o_ref, t_ref, out_ref, acc_ref = refs
    else:
        o_ref, t_ref, out_ref, acc_ref = refs
        w_ref = None

    c = pl.program_id(0)          # parallel (core) axis
    k = pl.program_id(1)          # sequential reduction axis
    steps = pl.num_programs(1)

    @pl.when(k == 0)
    def _():
        acc_ref[...] = jnp.zeros_like(acc_ref)

    tr = o_ref.shape[0]
    d = o_ref[...].astype(jnp.float32) - t_ref[...].astype(jnp.float32)
    prod = d * d                                   # (tr, LANES)
    if has_weight:
        prod = w_ref[...].astype(jnp.float32) * prod   # broadcast (tr,1|128)

    if rows_total is not None:
        # Ragged / overshoot tiles: mask the product so OOB garbage
        # (possibly NaN/Inf) cannot poison the sum.
        row0 = (c * steps + k) * tr
        row_ids = row0 + jax.lax.broadcasted_iota(jnp.int32, (tr, LANES), 0)
        prod = jnp.where(row_ids < rows_total, prod, 0.0)

    # Vector partial accumulation: pure VALU vreg adds, hidden under the DMA.
    if tr % SUBLANES == 0:
        acc_ref[...] += prod.reshape(tr // SUBLANES, SUBLANES, LANES).sum(axis=0)
    else:  # only possible for tiny single-tile inputs
        acc_ref[0:1, :] += jnp.sum(prod, axis=0, keepdims=True)

    @pl.when(k == steps - 1)
    def _():
        out_ref[...] = acc_ref[...]


def weighted_mse_loss(weights, output, target, *, rows_per_tile=4096,
                      num_cores=2):
    """mean(weights * (output - target)**2) computed in a Pallas TPU kernel.

    `weights` broadcasts against output/target exactly like in PyTorch.
    Returns a float32 scalar.
    """
    w = jnp.asarray(weights)
    o = jnp.asarray(output)
    t = jnp.asarray(target)
    full_shape = jnp.broadcast_shapes(w.shape, o.shape, t.shape)
    n_true = int(math.prod(full_shape))
    if n_true == 0:
        return jnp.float32(float("nan"))  # torch .mean() of empty is NaN

    # --- Find the trailing suffix over which the weights are constant
    # (scalar / per-sample / per-channel weights all qualify).
    ndim = len(full_shape)
    w_aligned = (1,) * (ndim - w.ndim) + tuple(w.shape)
    split = 0
    for ax in range(ndim):
        if w_aligned[ax] != 1:
            split = ax + 1
    prefix_shape = full_shape[:split]
    suffix = math.prod(full_shape[split:])

    post_scale = None
    if split == 0:
        # Scalar weight: don't stream it at all — fold into the final mean.
        pad = (-n_true) % LANES
        rows = (n_true + pad) // LANES

        def prep(x):
            x = jnp.broadcast_to(x, full_shape).reshape(-1)
            if pad:
                x = jnp.pad(x, (0, pad))  # zero pad -> (0-0)^2 contributes 0
            return x.reshape(rows, LANES)

        inputs = (prep(o), prep(t))
        weight_specs = []
        post_scale = w.reshape(()).astype(jnp.float32)
        has_weight = False
    elif suffix % LANES == 0:
        # Fast path: stream a tiny (rows, 1) per-row weight column instead of
        # a full-size broadcast weight tensor. No padding passes over HBM.
        rows = n_true // LANES
        reps = suffix // LANES
        n_prefix = math.prod(prefix_shape)
        w_prefix = jnp.broadcast_to(w.reshape(w_aligned[:split]),
                                    prefix_shape).astype(jnp.float32)
        w2 = jnp.broadcast_to(w_prefix.reshape(n_prefix, 1, 1),
                              (n_prefix, reps, 1)).reshape(rows, 1)
        o2 = jnp.broadcast_to(o, full_shape).reshape(rows, LANES)
        t2 = jnp.broadcast_to(t, full_shape).reshape(rows, LANES)
        inputs = (w2, o2, t2)
        wcols = 1
        has_weight = True
    else:
        # Generic fallback (weights vary inside the suffix / suffix not a
        # multiple of 128): broadcast + pad once and stream three arrays.
        pad = (-n_true) % LANES
        rows = (n_true + pad) // LANES

        def prep(x):
            x = jnp.broadcast_to(x, full_shape).reshape(-1)
            if pad:
                x = jnp.pad(x, (0, pad))  # zero pad contributes 0
            return x.reshape(rows, LANES)

        inputs = (prep(w), prep(o), prep(t))
        wcols = LANES
        has_weight = True

    # --- Tiling: large lane-dense tiles, capped so double-buffered inputs
    # stay well inside v7x's 64 MiB VMEM.
    rows_per_tile = max(SUBLANES, min(int(rows_per_tile), 16384))
    rows_per_tile -= rows_per_tile % SUBLANES
    tr = rows if rows <= rows_per_tile else rows_per_tile
    nblocks = -(-rows // tr)
    nc = max(1, min(int(num_cores), nblocks))   # never schedule empty cores
    steps = -(-nblocks // nc)
    full_cover = (nc * steps * tr == rows)

    data_spec = pl.BlockSpec((tr, LANES), lambda c, k: (c * steps + k, 0))
    out_spec = pl.BlockSpec((SUBLANES, LANES), lambda c, k: (c, 0))
    if has_weight:
        in_specs = [pl.BlockSpec((tr, wcols), lambda c, k: (c * steps + k, 0)),
                    data_spec, data_spec]
    else:
        in_specs = [data_spec, data_spec]

    kernel = functools.partial(
        _wmse_kernel,
        rows_total=None if full_cover else rows,
        has_weight=has_weight)

    partials = pl.pallas_call(
        kernel,
        out_shape=jax.ShapeDtypeStruct((nc * SUBLANES, LANES), jnp.float32),
        grid_spec=pltpu.PrefetchScalarGridSpec(
            num_scalar_prefetch=0,
            grid=(nc, steps),
            in_specs=in_specs,
            out_specs=out_spec,
            scratch_shapes=[pltpu.VMEM((SUBLANES, LANES), jnp.float32)],
        ),
        compiler_params=pltpu.CompilerParams(
            dimension_semantics=("parallel", "arbitrary"),
            vmem_limit_bytes=32 * 1024 * 1024,
        ),
    )(*inputs)

    # Tiny final cross-lane reduce + mean scaling outside the kernel.
    result = jnp.sum(partials) / jnp.float32(n_true)
    if post_scale is not None:
        result = result * post_scale
    return result


if __name__ == "__main__":
    key = jax.random.PRNGKey(0)
    k_o, k_t = jax.random.split(key, 2)

    # Small NCHW shapes consistent with a typical conv output.
    B, C, H, W = 2, 4, 16, 16
    # Deterministic "parameter": per-channel weights, broadcast over B/H/W
    # (same broadcasting semantics as the PyTorch module's self.weights * ...).
    weights = (jnp.arange(1, C + 1, dtype=jnp.float32) / C).reshape(1, C, 1, 1)

    output = jax.random.normal(k_o, (B, C, H, W), dtype=jnp.float32)
    target = jax.random.normal(k_t, (B, C, H, W), dtype=jnp.float32)

    loss = weighted_mse_loss(weights, output, target)
    loss = jax.block_until_ready(loss)

    # Reference check in plain JAX.
    ref = jnp.mean(weights * (output - target) ** 2)
    assert jnp.allclose(loss, ref, rtol=1e-5, atol=1e-6), (loss, ref)

    # Also exercise the scalar-weight path once (no weight stream).
    loss_s = weighted_mse_loss(0.5, output, target)
    ref_s = jnp.mean(0.5 * (output - target) ** 2)
    assert jnp.allclose(jax.block_until_ready(loss_s), ref_s,
                        rtol=1e-5, atol=1e-6), (loss_s, ref_s)

    print("KERNEL_OK")
</pallas_src>

<mosaic_0001>
module attributes {stable_mosaic.version = 11 : i64} {
  func.func @_wmse_kernel(%arg0: i32, %arg1: i32, %arg2: memref<16x1xf32, #tpu.memory_space<vmem>>, %arg3: memref<16x128xf32, #tpu.memory_space<vmem>>, %arg4: memref<16x128xf32, #tpu.memory_space<vmem>>, %arg5: memref<8x128xf32, #tpu.memory_space<vmem>>, %arg6: memref<8x128xf32, #tpu.memory_space<vmem>>) attributes {dimension_semantics = [#tpu.dimension_semantics<parallel>, #tpu.dimension_semantics<arbitrary>], iteration_bounds = array<i64: 1, 1>, scalar_prefetch = 0 : i64, scratch_operands = 1 : i64, tpu.core_type = #tpu.core_type<tc>, window_params = [{transform_indices = @transform_0, window_bounds = array<i64: 16, 1>}, {transform_indices = @transform_1, window_bounds = array<i64: 16, 128>}, {transform_indices = @transform_2, window_bounds = array<i64: 16, 128>}, {transform_indices = @transform_3, window_bounds = array<i64: 8, 128>}]} {
    %c0_i32 = arith.constant 0 : i32
    %0 = arith.cmpi eq, %arg1, %c0_i32 : i32
    %1 = arith.extui %0 : i1 to i32
    %c0_i32_0 = arith.constant 0 : i32
    %2 = arith.cmpi ne, %1, %c0_i32_0 : i32
    scf.if %2 {
      %cst_12 = arith.constant 0.000000e+00 : f32
      %18 = vector.broadcast %cst_12 : f32 to vector<8x128xf32>
      %c0_13 = arith.constant 0 : index
      %c0_14 = arith.constant 0 : index
      %19 = vector.load %arg6[%c0_13, %c0_14] : memref<8x128xf32, #tpu.memory_space<vmem>>, vector<8x128xf32>
      tpu.vector_store %arg6[%c0_13, %c0_14], %18 {strides = array<i32>} : memref<8x128xf32, #tpu.memory_space<vmem>>, vector<8x128xf32>,
    } else {
    }
    %c0 = arith.constant 0 : index
    %c0_1 = arith.constant 0 : index
    %3 = vector.load %arg3[%c0, %c0_1] : memref<16x128xf32, #tpu.memory_space<vmem>>, vector<16x128xf32>
    %c0_2 = arith.constant 0 : index
    %c0_3 = arith.constant 0 : index
    %4 = vector.load %arg4[%c0_2, %c0_3] : memref<16x128xf32, #tpu.memory_space<vmem>>, vector<16x128xf32>
    %5 = arith.subf %3, %4 : vector<16x128xf32>
    %6 = arith.mulf %5, %5 : vector<16x128xf32>
    %c0_4 = arith.constant 0 : index
    %c0_5 = arith.constant 0 : index
    %7 = vector.load %arg2[%c0_4, %c0_5] : memref<16x1xf32, #tpu.memory_space<vmem>>, vector<16x1xf32>
    %8 = vector.broadcast %7 : vector<16x1xf32> to vector<16x128xf32>
    %9 = arith.mulf %8, %6 : vector<16x128xf32>
    %c0_6 = arith.constant 0 : index
    %c0_7 = arith.constant 0 : index
    %10 = vector.load %arg6[%c0_6, %c0_7] : memref<8x128xf32, #tpu.memory_space<vmem>>, vector<8x128xf32>
    %11 = vector.shape_cast %9 : vector<16x128xf32> to vector<2x8x128xf32>
    %cst = arith.constant dense<0.000000e+00> : vector<8x128xf32>
    %12 = vector.multi_reduction <add>, %11, %cst [0] : vector<2x8x128xf32> to vector<8x128xf32>
    %13 = arith.addf %10, %12 : vector<8x128xf32>
    %c0_8 = arith.constant 0 : index
    %c0_9 = arith.constant 0 : index
    %14 = vector.load %arg6[%c0_8, %c0_9] : memref<8x128xf32, #tpu.memory_space<vmem>>, vector<8x128xf32>
    tpu.vector_store %arg6[%c0_8, %c0_9], %13 {strides = array<i32>} : memref<8x128xf32, #tpu.memory_space<vmem>>, vector<8x128xf32>,
    %c0_i32_10 = arith.constant 0 : i32
    %15 = arith.cmpi eq, %arg1, %c0_i32_10 : i32
    %16 = arith.extui %15 : i1 to i32
    %c0_i32_11 = arith.constant 0 : i32
    %17 = arith.cmpi ne, %16, %c0_i32_11 : i32
    scf.if %17 {
      %c0_12 = arith.constant 0 : index
      %c0_13 = arith.constant 0 : index
      %18 = vector.load %arg6[%c0_12, %c0_13] : memref<8x128xf32, #tpu.memory_space<vmem>>, vector<8x128xf32>
      %c0_14 = arith.constant 0 : index
      %c0_15 = arith.constant 0 : index
      %19 = vector.load %arg5[%c0_14, %c0_15] : memref<8x128xf32, #tpu.memory_space<vmem>>, vector<8x128xf32>
      tpu.vector_store %arg5[%c0_14, %c0_15], %18 {strides = array<i32>} : memref<8x128xf32, #tpu.memory_space<vmem>>, vector<8x128xf32>,
    } else {
    }
    return
  }
  func.func @transform_0(%arg0: i32, %arg1: i32) -> (i32, i32) {
    %c1_i32 = arith.constant 1 : i32
    %0 = arith.muli %arg0, %c1_i32 : i32
    %1 = arith.addi %0, %arg1 : i32
    %c0_i32 = arith.constant 0 : i32
    %c0_i32_0 = arith.constant 0 : i32
    return %1, %c0_i32 : i32, i32
  }
  func.func @transform_1(%arg0: i32, %arg1: i32) -> (i32, i32) {
    %c1_i32 = arith.constant 1 : i32
    %0 = arith.muli %arg0, %c1_i32 : i32
    %1 = arith.addi %0, %arg1 : i32
    %c0_i32 = arith.constant 0 : i32
    %c0_i32_0 = arith.constant 0 : i32
    return %1, %c0_i32 : i32, i32
  }
  func.func @transform_2(%arg0: i32, %arg1: i32) -> (i32, i32) {
    %c1_i32 = arith.constant 1 : i32
    %0 = arith.muli %arg0, %c1_i32 : i32
    %1 = arith.addi %0, %arg1 : i32
    %c0_i32 = arith.constant 0 : i32
    %c0_i32_0 = arith.constant 0 : i32
    return %1, %c0_i32 : i32, i32
  }
  func.func @transform_3(%arg0: i32, %arg1: i32) -> (i32, i32) {
    %c0_i32 = arith.constant 0 : i32
    %c0_i32_0 = arith.constant 0 : i32
    return %arg0, %c0_i32 : i32, i32
  }
}

</mosaic_0001>

<llo_original>
// kernel: tpu_custom_call.1
$region0: #{tpu_custom_call.1}
  #allocation0 [shape = 'u32[]', space=smem, size = 0x4, offset = 0x4, fixed_abs, tag = 'smem constant byte address 0x4 - core index']
  #allocation1 [shape = 'u32[144,128]{1,0:T(1,128)}', space=vmem, size = 0x12000, scoped, tag = 'internal scratch']
  #allocation2 [shape = 'f32[8,128]{1,0:T(8,128)}', space=vmem, size = 0x1000, scoped, tag = 'scratch operand']
  %s0 = inlined_call_operand.vmem [shape: f32[16,1], index: 0, kind: input, shape index: {}]
  %s1 = inlined_call_operand.vmem [shape: f32[16,128], index: 1, kind: input, shape index: {}]
  %s2 = inlined_call_operand.hbm [shape: f32[16,128], index: 2, kind: input, shape index: {}]
  %s3 = inlined_call_operand.hbm [shape: f32[8,128], index: 3, kind: output, shape index: {}]
  %s4 = sld [smem:[#allocation0]]
  $region34: #{tpu_custom_call.1} parent=0
    _
  %s6 = ssub.s32 1, %s4
  %s7 = scalar_select 0, %s6, %s4
  $region1: #{tpu_custom_call.1} parent=0
    #allocation3 [shape = 'u8[8192]{0}', space=vmem, size = 0x2000, scoped, tag = 'input window, operand 2, single buffered']
    #allocation4 [shape = 's32[1]{0}', space=sflag, size = 0x4, scoped, tag = 'scoped memory for tpu_custom_call.1']
    #allocation5 [shape = 's32[1]{0}', space=sflag, size = 0x4, scoped, tag = 'scoped memory for tpu_custom_call.1']
    #allocation6 [shape = 'u8[4096]{0}', space=vmem, size = 0x1000, scoped, tag = 'output window, operand 0, single buffered']
    %8 = vsyncpa [#allocation4], 0
    %9 = vsyncpa [#allocation5], 0
    // Predicated region
    $region2: #{tpu_custom_call.1} parent=1 // pred_check
      _
    $region3: #{tpu_custom_call.1} parent=1 // pred_check_branch
      %11 = sbr.rel (0) target = $region5
    $region4: #{tpu_custom_call.1} parent=1 // pred_region
      %s12 = sadd.s32 0, 0
      %s13 = smul.u32 2, %s12
      %p14 = scmp.lt.s32.totalorder %s13, 1
      %s15 = scalar_select %p14, %s13, 1
      %s16 = smul.addr %s15, 8
      %s17 = scalar_lea.vmem %s0, %s16
      %s18 = sadd.s32 0, 0
      %s19 = smul.u32 2, %s18
    $region5: #{tpu_custom_call.1} parent=1 // pred_fallthru
      _
    // Predicated region
    $region6: #{tpu_custom_call.1} parent=1 // pred_check
      _
    $region7: #{tpu_custom_call.1} parent=1 // pred_check_branch
      %21 = sbr.rel (0) target = $region9
    $region8: #{tpu_custom_call.1} parent=1 // pred_region
      %s22 = sadd.s32 0, 0
      %s23 = smul.u32 2, %s22
      %p24 = scmp.lt.s32.totalorder %s23, 1
      %s25 = scalar_select %p24, %s23, 1
      %s26 = smul.addr %s25, 8
      %s27 = scalar_lea.vmem %s1, %s26
      %s28 = sadd.s32 0, 0
      %s29 = smul.u32 2, %s28
    $region9: #{tpu_custom_call.1} parent=1 // pred_fallthru
      _
    // Predicated region
    $region10: #{tpu_custom_call.1} parent=1 // pred_check
      _
    $region11: #{tpu_custom_call.1} parent=1 // pred_check_branch
      %31 = sbr.rel (0) target = $region13
    $region12: #{tpu_custom_call.1} parent=1 // pred_region
      %s32 = sadd.s32 0, 0
      %s33 = smul.u32 2, %s32
      %s35 = ssub.s32 256, 256
      %36 = vsyncadd [#allocation4], %s35
      %s37 = smul.addr %s33, 128
      %s38 = scalar_lea.hbm %s2, %s37
      %s39 = sshll.u32 [#allocation3], 4
      %s40 = int_to_ptr.vmem [resolvable:$true] %s39
      %45 = dma.hbm_to_vmem [thread:$0]  %s38, 256, %s40, [#allocation4], 128, 128, 8
    $region13: #{tpu_custom_call.1} parent=1 // pred_fallthru
      _
    // Predicated region
    $region14: #{tpu_custom_call.1} parent=1 // pred_check
      _
    $region15: #{tpu_custom_call.1} parent=1 // pred_check_branch
      %47 = sbr.rel (0) target = $region17
    $region16: #{tpu_custom_call.1} parent=1 // pred_region
      %48 = dma.done [#allocation4], 256
    $region17: #{tpu_custom_call.1} parent=1 // pred_fallthru
      _
    %s49 = sadd.s32 0, 0
    %s50 = smul.u32 2, %s49
    %p51 = scmp.lt.s32.totalorder %s50, 1
    %s52 = scalar_select %p51, %s50, 1
    %s53 = smul.addr %s52, 8
    %s54 = scalar_lea.vmem %s0, %s53
    %s55 = sadd.s32 0, 0
    %s56 = smul.u32 2, %s55
    %p57 = scmp.lt.s32.totalorder %s56, 1
    %s58 = scalar_select %p57, %s56, 1
    %s59 = smul.addr %s58, 8
    %s60 = scalar_lea.vmem %s1, %s59
    %s61 = sadd.s32 0, 0
    %s62 = smul.u32 2, %s61
    %p63 = scmp.lt.s32.totalorder %s62, 1
    %s64 = scalar_select %p63, %s62, 1
    %s65 = smul.addr %s64, 8
    %s66 = scalar_lea.vmem %s0, %s65
    %s67 = sadd.s32 0, 0
    %s68 = smul.u32 2, %s67
    %s69 = sadd.s32 0, 0
    %s70 = smul.u32 2, %s69
    %p71 = scmp.lt.s32.totalorder %s70, 1
    %s72 = scalar_select %p71, %s70, 1
    %s73 = smul.addr %s72, 8
    %s74 = scalar_lea.vmem %s1, %s73
    %s75 = sadd.s32 0, 0
    %s76 = smul.u32 2, %s75
    %s77 = sadd.s32 0, 0
    %s78 = smul.u32 2, %s77
    %p79 = scmp.eq.s32.totalorder 0, 0
    // Predicated region
    $region18: #{tpu_custom_call.1} parent=1 // pred_check
      %p80 = pneg %p79
    $region19: #{tpu_custom_call.1} parent=1 // pred_check_branch
      %82 = sbr.rel (%p80) target = $region21
    $region20: #{tpu_custom_call.1} parent=1 // pred_region
      %83 = vst [vmem:[#allocation2] sm:$0xff] 0.0
    $region21: #{tpu_custom_call.1} parent=1 // pred_fallthru
      _
    %v84 = vld [vmem:[%s74] sm:$0xff]
    %v85 = vld [vmem:[%s74 + $0x8] sm:$0xff]
    %v86 = vld [vmem:[#allocation3] sm:$0xff]
    %v87 = vld [vmem:[#allocation3 + $0x8] sm:$0xff]
    %v88 = vsub.f32 %v84, %v86
    %v89 = vsub.f32 %v85, %v87
    %v90 = vmul.f32 %v88, %v88
    %v91 = vmul.f32 %v89, %v89
    %v92 = vld [vmem:[%s66] sm:$0xff]
    %v93 = vld [vmem:[%s66 + $0x8] sm:$0xff]
    %95 = vset.pattern.permute.xlu0 0
    %96 = vperm.xlu0 %95, %v92
    %v97 = vpop.permute.xlu0 %96
    %100 = vset.pattern.permute.xlu0 0
    %101 = vperm.xlu0 %100, %v93
    %v102 = vpop.permute.xlu0 %101
    %v104 = vmul.f32 %v97, %v90
    %v105 = vmul.f32 %v102, %v91
    %v106 = vld [vmem:[#allocation2] sm:$0xff]
    %v107 = vadd.f32 %v104, %v105
    %v108 = vadd.f32 %v106, %v107
    %109 = vst [vmem:[#allocation2] sm:$0xff] %v108
    // Predicated region
    $region22: #{tpu_custom_call.1} parent=1 // pred_check
      %p110 = pneg %p79
    $region23: #{tpu_custom_call.1} parent=1 // pred_check_branch
      %112 = sbr.rel (%p110) target = $region25
    $region24: #{tpu_custom_call.1} parent=1 // pred_region
      %v113 = vld [vmem:[#allocation2] sm:$0xff]
      %114 = vst [vmem:[#allocation6] sm:$0xff] %v113
    $region25: #{tpu_custom_call.1} parent=1 // pred_fallthru
      _
    // Predicated region
    $region26: #{tpu_custom_call.1} parent=1 // pred_check
      _
    $region27: #{tpu_custom_call.1} parent=1 // pred_check_branch
      %116 = sbr.rel (0) target = $region29
    $region28: #{tpu_custom_call.1} parent=1 // pred_region
      %s118 = ssub.s32 128, 128
      %119 = vsyncadd [#allocation5], %s118
      %s121 = sshll.u32 [#allocation6], 4
      %s122 = int_to_ptr.vmem [resolvable:$true] %s121
      %124 = dma.vmem_to_hbm [thread:$0]  %s122, 128, %s3, [#allocation5]
    $region29: #{tpu_custom_call.1} parent=1 // pred_fallthru
      _
    // Predicated region
    $region30: #{tpu_custom_call.1} parent=1 // pred_check
      _
    $region31: #{tpu_custom_call.1} parent=1 // pred_check_branch
      %126 = sbr.rel (0) target = $region33
    $region32: #{tpu_custom_call.1} parent=1 // pred_region
      %127 = dma.done [#allocation5], 128
    $region33: #{tpu_custom_call.1} parent=1 // pred_fallthru
      _
    %128 = vsyncpa [#allocation4], 1
    %129 = vsyncpa [#allocation5], 1

</llo_original>
